<compile_context>
chip_gen: v7x
topology: tpu7x:2x2x1
jax: 0.10.0
libtpu: 0.0.40
codegen_flags: <defaults>
</compile_context>

<pallas_src>
import numpy as np

import jax
import jax.numpy as jnp
from jax import lax
from jax.experimental import pallas as pl
from jax.experimental.pallas import tpu as pltpu


# ----------------------------------------------------------------------------
# Small helpers
# ----------------------------------------------------------------------------
def _round_up(v, m):
    return ((v + m - 1) // m) * m


def _block_diag(m, n):
    r, c = m.shape
    out = np.zeros((n * r, n * c), dtype=m.dtype)
    for i in range(n):
        out[i * r:(i + 1) * r, i * c:(i + 1) * c] = m
    return out


def _num_grid_steps(batch):
    """2 grid steps on dual-TensorCore parts (v4 megacore / v7x) so both TCs get work;
    otherwise collapse to a single step and fold the whole batch into the matmul M dim."""
    try:
        kind = jax.devices()[0].device_kind.lower()
    except Exception:  # pragma: no cover - defensive
        kind = ""
    dual_core = any(t in kind for t in ("v4", "v7", "7x"))
    return min(batch, 2) if dual_core else 1


# ----------------------------------------------------------------------------
# Host-side weight preparation
# ----------------------------------------------------------------------------
def _fused_conv_weights(w_oihw, bias, W_in, stride, padding, pool):
    """Column-banded conv weight with W zero-padding and column average-pool folded in.

    Returns:
      wf : (kh, W_in*Cin, Wp*Cout) float32 -- one rhs band per kernel row ky
      bf : (1, Wp*Cout)            float32 -- bias row after column pooling (exact)
    """
    Cout, Cin, kh, kw = w_oihw.shape
    Wc = (W_in + 2 * padding - kw) // stride + 1
    Wp = (Wc - pool) // pool + 1
    wnp = np.asarray(w_oihw, dtype=np.float32)

    band = np.zeros((kh, W_in * Cin, Wc * Cout), dtype=np.float32)
    for ky in range(kh):
        for kx in range(kw):
            blk = wnp[:, :, ky, kx].T                      # (Cin, Cout)
            for w in range(Wc):
                col = w * stride + kx - padding            # unpadded input column
                if 0 <= col < W_in:                        # padded columns contribute zero
                    band[ky, col * Cin:(col + 1) * Cin, w * Cout:(w + 1) * Cout] += blk

    pwm = np.zeros((Wc * Cout, Wp * Cout), dtype=np.float32)
    for p in range(Wp):
        for k in range(pool):
            w = p * pool + k
            for co in range(Cout):
                pwm[w * Cout + co, p * Cout + co] = 1.0 / pool

    wf = np.einsum("kab,bc->kac", band, pwm)               # (kh, W_in*Cin, Wp*Cout)
    brow = np.tile(np.asarray(bias, np.float32)[None, :], (1, Wc)).reshape(1, Wc * Cout)
    bf = brow @ pwm                                        # (1, Wp*Cout)
    return wf, bf, Wc, Wp


def _row_pool_matrix(Hc, pool):
    Hp = (Hc - pool) // pool + 1
    ph = np.zeros((Hp, Hc), dtype=np.float32)
    for p in range(Hp):
        ph[p, p * pool:p * pool + pool] = 1.0 / pool
    return ph, Hp


# ----------------------------------------------------------------------------
# Fused kernel (Nb batch elements per grid step)
# ----------------------------------------------------------------------------
def _make_cnn_kernel(layers, K0, Nb, Cpad, fc_bias_row):
    num_conv = len(layers)

    def kernel(*args):
        x_ref = args[0]                                    # (Nb, Hc0, kh0*W*Cin) bf16
        wf_refs = args[1:1 + num_conv]                     # banded conv weights, bf16
        wfc_ref = args[1 + num_conv]                       # (fc_in, Cpad) bf16
        c_ref = args[2 + num_conv]                         # packed f32 constants
        o_ref = args[3 + num_conv]                         # (1, Nb, Cpad) f32
        pad_bufs = args[4 + num_conv:4 + num_conv + (num_conv - 1)]
        fc_buf = args[-1]                                  # (Nb, fc_in) bf16 staging

        y = None
        for li, L in enumerate(layers):
            M = Nb * L["Hc"]
            bias = c_ref[li:li + 1, 0:L["ncol"]]           # f32, pooled conv bias row
            if li == 0:
                # layer 0: row-im2col input -> single K=kh*W*Cin matmul
                x0 = x_ref[...].reshape(M, K0)             # merge (Nb, Hc0) -> M sublanes
                acc = jnp.dot(x0, wf_refs[0][...],
                              preferred_element_type=jnp.float32) + bias
            else:
                buf = pad_bufs[li - 1]                     # (Nb, Hin+2*pad, K) bf16 scratch
                pad, Hin, K = L["pad"], L["Hin"], L["K"]
                if pad > 0:
                    # zero only the pad rows (tiny, done every step so it stays correct even
                    # if the parallel grid axis is sharded across TensorCores)
                    zrow = jnp.zeros((Nb, pad, K), jnp.bfloat16)
                    buf[:, 0:pad, :] = zrow
                    buf[:, pad + Hin:pad + Hin + pad, :] = zrow
                # write only the center rows, already in bf16 (cast hoisted out of ky loop)
                buf[:, pad:pad + Hin, :] = y.astype(jnp.bfloat16).reshape(Nb, Hin, K)
                # accumulator initialized with the broadcast bias (drops the epilogue add)
                acc = jnp.broadcast_to(bias, (M, L["ncol"]))
                for ky in range(L["kh"]):                  # static unrolled kernel-row loop
                    xk = buf[:, ky:ky + L["Hc"], :].reshape(M, K)
                    acc = acc + jnp.dot(xk, wf_refs[li][ky],
                                        preferred_element_type=jnp.float32)
            # row average pool (bf16 MXU, f32 accumulate) then ReLU
            ph = c_ref[L["ph_row"]:L["ph_row"] + Nb * L["Hp"],
                       0:Nb * L["Hc"]].astype(jnp.bfloat16)
            y = jnp.maximum(
                jnp.dot(ph, acc.astype(jnp.bfloat16),
                        preferred_element_type=jnp.float32), 0.0)   # (Nb*Hp, ncol) f32

        # fully connected: flatten the NHWC slab via the bf16 staging buffer (Hp masked
        # lane stores), then ONE (Nb, fc_in) @ (fc_in, Cpad) matmul.
        last = layers[-1]
        Hp, ncol = last["Hp"], last["ncol"]
        y3 = y.astype(jnp.bfloat16).reshape(Nb, Hp, ncol)
        for h in range(Hp):                                # static, tiny
            fc_buf[:, h * ncol:(h + 1) * ncol] = y3[:, h, :]
        bfc = c_ref[fc_bias_row:fc_bias_row + 1, 0:Cpad]   # f32 FC bias row
        o_ref[0] = jnp.dot(fc_buf[...], wfc_ref[...],
                           preferred_element_type=jnp.float32) + bfc

    return kernel


# ----------------------------------------------------------------------------
# Wrapper: mirrors the PyTorch module forward
# ----------------------------------------------------------------------------
def cnn_forward(x_nchw, conv_params, w_fc, b_fc, pool, num_classes):
    if x_nchw.ndim == 3:                                   # torch: unsqueeze(0)
        x_nchw = x_nchw[None]
    N, Cin, H, W = x_nchw.shape
    num_conv = len(conv_params)
    assert num_conv >= 1  # TODO(synk): the no-conv (pure linear) configuration is not wired.

    G = _num_grid_steps(N)                                 # grid steps
    Nb = -(-N // G)                                        # batch elements per step
    Npad = G * Nb

    # ---- per-layer host folding ----
    layers = []
    wf_ops = []
    cur_H, cur_W, cur_C = H, W, Cin
    for li, (w_oihw, bias, stride, padding) in enumerate(conv_params):
        # TODO(synk): only stride == 1 is wired through the kernel (the test config uses 1).
        assert stride == 1, "kernel currently supports stride == 1"
        Cout, _, kh, kw = w_oihw.shape
        wf_band, bf, Wc, Wp = _fused_conv_weights(w_oihw, bias, cur_W, stride, padding, pool)
        Hc = (cur_H + 2 * padding - kh) // stride + 1
        ph, Hp = _row_pool_matrix(Hc, pool)
        layers.append(dict(kh=kh, pad=padding, Hin=cur_H, K=cur_W * cur_C,
                           Hc=Hc, Hp=Hp, ncol=Wp * Cout, bf=bf, ph=ph))
        if li == 0:
            # flatten the kh bands along rows to match the row-im2col input
            wf_ops.append(jnp.asarray(
                wf_band.reshape(kh * cur_W * cur_C, Wp * Cout), jnp.bfloat16))
        else:
            wf_ops.append(jnp.asarray(wf_band, jnp.bfloat16))
        cur_H, cur_W, cur_C = Hp, Wp, Cout

    # ---- layer-0 input: NHWC, H-padded, row-im2col (kh bands concatenated along lanes) ----
    L0 = layers[0]
    pad0, kh0, Hc0 = L0["pad"], L0["kh"], L0["Hc"]
    K0 = kh0 * W * Cin
    x_nhwc = jnp.transpose(x_nchw, (0, 2, 3, 1)).astype(jnp.float32)
    x_nhwc = jnp.pad(x_nhwc, ((0, Npad - N), (pad0, pad0), (0, 0), (0, 0)))
    x2d = x_nhwc.reshape(Npad, H + 2 * pad0, W * Cin)
    x_im2col = jnp.concatenate(
        [x2d[:, ky:ky + Hc0, :] for ky in range(kh0)], axis=-1).astype(jnp.bfloat16)

    # ---- FC weight: permute rows from NCHW flatten order to the kernel's (H, W*C) slab order,
    #      pad classes to a lane-dense multiple of 128 ----
    fc_in = cur_C * cur_H * cur_W
    assert w_fc.shape == (fc_in, num_classes), (w_fc.shape, fc_in, num_classes)
    Cpad = _round_up(num_classes, 128)
    wfc = np.asarray(w_fc, np.float32).reshape(cur_C, cur_H, cur_W, num_classes)
    wfc = wfc.transpose(1, 2, 0, 3).reshape(fc_in, num_classes)
    wfc_pad = np.zeros((fc_in, Cpad), np.float32)
    wfc_pad[:, :num_classes] = wfc

    # ---- consolidate all small f32 constants into a single lane-dense operand ----
    width = _round_up(max([Cpad, 128] + [L["ncol"] for L in layers]
                          + [Nb * L["Hc"] for L in layers]), 128)
    fc_bias_row = num_conv
    row = _round_up(num_conv + 1, 8)                       # bias section, 8-row aligned
    for L in layers:
        L["ph_row"] = row                                  # each ph block starts 8-aligned
        row += _round_up(Nb * L["Hp"], 8)
    consts = np.zeros((row, width), np.float32)
    for li, L in enumerate(layers):
        consts[li, :L["ncol"]] = L["bf"][0]
        consts[L["ph_row"]:L["ph_row"] + Nb * L["Hp"], :Nb * L["Hc"]] = \
            _block_diag(L["ph"], Nb)                       # block-diag over the batch block
    consts[fc_bias_row, :num_classes] = np.asarray(b_fc, np.float32)

    # ---- pallas_call plumbing ----
    def _const_spec(shape):
        zeros = (0,) * len(shape)
        return pl.BlockSpec(tuple(shape), lambda g: zeros)

    operands = [x_im2col] + wf_ops + [jnp.asarray(wfc_pad, jnp.bfloat16),
                                      jnp.asarray(consts, jnp.float32)]
    in_specs = ([pl.BlockSpec((Nb, Hc0, K0), lambda g: (g, 0, 0))]
                + [_const_spec(op.shape) for op in operands[1:]])

    scratch_shapes = [pltpu.VMEM((Nb, L["Hin"] + 2 * L["pad"], L["K"]), jnp.bfloat16)
                      for L in layers[1:]]
    scratch_shapes.append(pltpu.VMEM((Nb, fc_in), jnp.bfloat16))   # FC flatten staging

    out = pl.pallas_call(
        _make_cnn_kernel(layers, K0, Nb, Cpad, fc_bias_row),
        grid=(G,),
        in_specs=in_specs,
        out_specs=pl.BlockSpec((1, Nb, Cpad), lambda g: (g, 0, 0)),
        out_shape=jax.ShapeDtypeStruct((G, Nb, Cpad), jnp.float32),
        scratch_shapes=scratch_shapes,
        compiler_params=pltpu.CompilerParams(
            dimension_semantics=("parallel",)),            # batch blocks across TCs on v7x
    )(*operands)

    return out.reshape(Npad, Cpad)[:N, :num_classes]


# ----------------------------------------------------------------------------
# pure-JAX reference (for correctness check)
# ----------------------------------------------------------------------------
def reference_forward(x_nchw, conv_params, w_fc, b_fc, pool):
    y = x_nchw
    for (w_oihw, bias, stride, padding) in conv_params:
        y = lax.conv_general_dilated(
            y, w_oihw, (stride, stride), [(padding, padding), (padding, padding)],
            dimension_numbers=("NCHW", "OIHW", "NCHW"))
        y = y + bias[None, :, None, None]
        y = lax.reduce_window(y, 0.0, lax.add, (1, 1, pool, pool), (1, 1, pool, pool), "VALID")
        y = y / float(pool * pool)
        y = jnp.maximum(y, 0.0)
    flat = y.reshape(y.shape[0], -1)
    return flat @ w_fc + b_fc


# ----------------------------------------------------------------------------
if __name__ == "__main__":
    key = jax.random.PRNGKey(0)

    # module config: CNN(input_channels=4, num_classes=10,
    #                    conv_layers=[(8,3,1,1),(16,3,1,1)], size_img=16, pool_size=2)
    batch, input_channels, size_img = 2, 4, 16
    num_classes = 10
    conv_layers_cfg = [(8, 3, 1, 1), (16, 3, 1, 1)]
    pool = 2

    # deterministic synthetic parameters
    conv_params = []
    in_ch = input_channels
    s = size_img
    for (out_ch, k, stride, padding) in conv_layers_cfg:
        key, kw_, kb_ = jax.random.split(key, 3)
        w = jax.random.normal(kw_, (out_ch, in_ch, k, k), jnp.float32) * 0.1
        b = jax.random.normal(kb_, (out_ch,), jnp.float32) * 0.1
        conv_params.append((w, b, stride, padding))
        in_ch = out_ch
        s = int(np.floor((s - k + 2 * padding) / stride) + 1)
        s = int(np.floor((s - pool) / pool) + 1)
    fc_in = in_ch * s * s
    key, kwfc, kbfc = jax.random.split(key, 3)
    w_fc = jax.random.normal(kwfc, (fc_in, num_classes), jnp.float32) * 0.1
    b_fc = jax.random.normal(kbfc, (num_classes,), jnp.float32) * 0.1

    # deterministic input
    key, kx = jax.random.split(key)
    x = jax.random.normal(kx, (batch, input_channels, size_img, size_img), jnp.float32)

    out = cnn_forward(x, conv_params, w_fc, b_fc, pool, num_classes)
    out = jax.block_until_ready(out)

    ref = jax.block_until_ready(reference_forward(x, conv_params, w_fc, b_fc, pool))

    assert out.shape == (batch, num_classes), out.shape
    if not np.allclose(np.asarray(out), np.asarray(ref), rtol=5e-2, atol=3e-2):
        raise AssertionError(
            f"mismatch: max abs err {np.abs(np.asarray(out) - np.asarray(ref)).max()}")

    print("KERNEL_OK")
</pallas_src>

<mosaic_0001>
module attributes {stable_mosaic.version = 11 : i64} {
  func.func @kernel(%arg0: i32, %arg1: memref<2x16x192xbf16, #tpu.memory_space<vmem>>, %arg2: memref<192x64xbf16, #tpu.memory_space<vmem>>, %arg3: memref<3x64x64xbf16, #tpu.memory_space<vmem>>, %arg4: memref<256x128xbf16, #tpu.memory_space<vmem>>, %arg5: memref<32x128xf32, #tpu.memory_space<vmem>>, %arg6: memref<1x2x128xf32, #tpu.memory_space<vmem>>, %arg7: memref<2x10x64xbf16, #tpu.memory_space<vmem>>, %arg8: memref<2x256xbf16, #tpu.memory_space<vmem>>) attributes {dimension_semantics = [#tpu.dimension_semantics<parallel>], iteration_bounds = array<i64: 1>, scalar_prefetch = 0 : i64, scratch_operands = 2 : i64, tpu.core_type = #tpu.core_type<tc>, window_params = [{transform_indices = @transform_0, window_bounds = array<i64: 2, 16, 192>}, {pipeline_mode = #tpu.pipeline_mode<synchronous>, transform_indices = @transform_1, window_bounds = array<i64: 192, 64>}, {pipeline_mode = #tpu.pipeline_mode<synchronous>, transform_indices = @transform_2, window_bounds = array<i64: 3, 64, 64>}, {pipeline_mode = #tpu.pipeline_mode<synchronous>, transform_indices = @transform_3, window_bounds = array<i64: 256, 128>}, {pipeline_mode = #tpu.pipeline_mode<synchronous>, transform_indices = @transform_4, window_bounds = array<i64: 32, 128>}, {transform_indices = @transform_5, window_bounds = array<i64: 1, 2, 128>}]} {
    %c0 = arith.constant 0 : index
    %c0_0 = arith.constant 0 : index
    %0 = vector.load %arg5[%c0, %c0_0] : memref<32x128xf32, #tpu.memory_space<vmem>>, vector<1x64xf32>
    %c0_1 = arith.constant 0 : index
    %c0_2 = arith.constant 0 : index
    %c0_3 = arith.constant 0 : index
    %1 = vector.load %arg1[%c0_1, %c0_2, %c0_3] : memref<2x16x192xbf16, #tpu.memory_space<vmem>>, vector<2x16x192xbf16>
    %2 = vector.shape_cast %1 : vector<2x16x192xbf16> to vector<32x192xbf16>
    %c0_4 = arith.constant 0 : index
    %c0_5 = arith.constant 0 : index
    %3 = vector.load %arg2[%c0_4, %c0_5] : memref<192x64xbf16, #tpu.memory_space<vmem>>, vector<192x64xbf16>
    %cst = arith.constant dense<0.000000e+00> : vector<32x64xf32>
    %4 = tpu.matmul %2, %3, %cst {dimension_numbers = #tpu.dot_dimension_numbers<[1], [0], [0], [1], [0, 0, 1, 1], [], []>} : vector<32x192xbf16>, vector<192x64xbf16>, vector<32x64xf32> -> vector<32x64xf32>
    %5 = vector.broadcast %0 : vector<1x64xf32> to vector<32x64xf32>
    %6 = arith.addf %4, %5 : vector<32x64xf32>
    %c8 = arith.constant 8 : index
    %c0_6 = arith.constant 0 : index
    %7 = vector.load %arg5[%c8, %c0_6] : memref<32x128xf32, #tpu.memory_space<vmem>>, vector<16x32xf32>
    %8 = arith.truncf %7 : vector<16x32xf32> to vector<16x32xbf16>
    %9 = arith.truncf %6 : vector<32x64xf32> to vector<32x64xbf16>
    %cst_7 = arith.constant dense<0.000000e+00> : vector<16x64xf32>
    %10 = tpu.matmul %8, %9, %cst_7 {dimension_numbers = #tpu.dot_dimension_numbers<[1], [0], [0], [1], [0, 0, 1, 1], [], []>} : vector<16x32xbf16>, vector<32x64xbf16>, vector<16x64xf32> -> vector<16x64xf32>
    %cst_8 = arith.constant 0.000000e+00 : f32
    %11 = vector.broadcast %cst_8 : f32 to vector<16x64xf32>
    %12 = arith.maximumf %10, %11 : vector<16x64xf32>
    %c1 = arith.constant 1 : index
    %c0_9 = arith.constant 0 : index
    %13 = vector.load %arg5[%c1, %c0_9] : memref<32x128xf32, #tpu.memory_space<vmem>>, vector<1x64xf32>
    %cst_10 = arith.constant 0.000000e+00 : bf16
    %14 = vector.broadcast %cst_10 : bf16 to vector<2x1x64xbf16>
    %c0_11 = arith.constant 0 : index
    %c0_12 = arith.constant 0 : index
    %c0_13 = arith.constant 0 : index
    %15 = vector.load %arg7[%c0_11, %c0_12, %c0_13] : memref<2x10x64xbf16, #tpu.memory_space<vmem>>, vector<2x1x64xbf16>
    tpu.vector_store %arg7[%c0_11, %c0_12, %c0_13], %14 {strides = array<i32>} : memref<2x10x64xbf16, #tpu.memory_space<vmem>>, vector<2x1x64xbf16>,
    %c0_14 = arith.constant 0 : index
    %c9 = arith.constant 9 : index
    %c0_15 = arith.constant 0 : index
    %16 = vector.load %arg7[%c0_14, %c9, %c0_15] : memref<2x10x64xbf16, #tpu.memory_space<vmem>>, vector<2x1x64xbf16>
    tpu.vector_store %arg7[%c0_14, %c9, %c0_15], %14 {strides = array<i32>} : memref<2x10x64xbf16, #tpu.memory_space<vmem>>, vector<2x1x64xbf16>,
    %17 = arith.truncf %12 : vector<16x64xf32> to vector<16x64xbf16>
    %18 = vector.shape_cast %17 : vector<16x64xbf16> to vector<2x8x64xbf16>
    %c0_16 = arith.constant 0 : index
    %c1_17 = arith.constant 1 : index
    %c0_18 = arith.constant 0 : index
    %19 = vector.load %arg7[%c0_16, %c1_17, %c0_18] : memref<2x10x64xbf16, #tpu.memory_space<vmem>>, vector<2x8x64xbf16>
    tpu.vector_store %arg7[%c0_16, %c1_17, %c0_18], %18 {strides = array<i32>} : memref<2x10x64xbf16, #tpu.memory_space<vmem>>, vector<2x8x64xbf16>,
    %20 = vector.shape_cast %13 : vector<1x64xf32> to vector<1x64xf32>
    %21 = vector.broadcast %20 : vector<1x64xf32> to vector<16x64xf32>
    %c0_19 = arith.constant 0 : index
    %c0_20 = arith.constant 0 : index
    %c0_21 = arith.constant 0 : index
    %22 = vector.load %arg7[%c0_19, %c0_20, %c0_21] : memref<2x10x64xbf16, #tpu.memory_space<vmem>>, vector<2x8x64xbf16>
    %23 = vector.shape_cast %22 : vector<2x8x64xbf16> to vector<16x64xbf16>
    %c0_22 = arith.constant 0 : index
    %c0_23 = arith.constant 0 : index
    %c0_24 = arith.constant 0 : index
    %24 = vector.load %arg3[%c0_22, %c0_23, %c0_24] : memref<3x64x64xbf16, #tpu.memory_space<vmem>>, vector<1x64x64xbf16>
    %25 = vector.shape_cast %24 : vector<1x64x64xbf16> to vector<64x64xbf16>
    %cst_25 = arith.constant dense<0.000000e+00> : vector<16x64xf32>
    %26 = tpu.matmul %23, %25, %cst_25 {dimension_numbers = #tpu.dot_dimension_numbers<[1], [0], [0], [1], [0, 0, 1, 1], [], []>} : vector<16x64xbf16>, vector<64x64xbf16>, vector<16x64xf32> -> vector<16x64xf32>
    %27 = arith.addf %21, %26 : vector<16x64xf32>
    %c0_26 = arith.constant 0 : index
    %c1_27 = arith.constant 1 : index
    %c0_28 = arith.constant 0 : index
    %28 = vector.load %arg7[%c0_26, %c1_27, %c0_28] : memref<2x10x64xbf16, #tpu.memory_space<vmem>>, vector<2x8x64xbf16>
    %29 = vector.shape_cast %28 : vector<2x8x64xbf16> to vector<16x64xbf16>
    %c1_29 = arith.constant 1 : index
    %c0_30 = arith.constant 0 : index
    %c0_31 = arith.constant 0 : index
    %30 = vector.load %arg3[%c1_29, %c0_30, %c0_31] : memref<3x64x64xbf16, #tpu.memory_space<vmem>>, vector<1x64x64xbf16>
    %31 = vector.shape_cast %30 : vector<1x64x64xbf16> to vector<64x64xbf16>
    %cst_32 = arith.constant dense<0.000000e+00> : vector<16x64xf32>
    %32 = tpu.matmul %29, %31, %cst_32 {dimension_numbers = #tpu.dot_dimension_numbers<[1], [0], [0], [1], [0, 0, 1, 1], [], []>} : vector<16x64xbf16>, vector<64x64xbf16>, vector<16x64xf32> -> vector<16x64xf32>
    %33 = arith.addf %27, %32 : vector<16x64xf32>
    %c0_33 = arith.constant 0 : index
    %c2 = arith.constant 2 : index
    %c0_34 = arith.constant 0 : index
    %34 = vector.load %arg7[%c0_33, %c2, %c0_34] : memref<2x10x64xbf16, #tpu.memory_space<vmem>>, vector<2x8x64xbf16>
    %35 = vector.shape_cast %34 : vector<2x8x64xbf16> to vector<16x64xbf16>
    %c2_35 = arith.constant 2 : index
    %c0_36 = arith.constant 0 : index
    %c0_37 = arith.constant 0 : index
    %36 = vector.load %arg3[%c2_35, %c0_36, %c0_37] : memref<3x64x64xbf16, #tpu.memory_space<vmem>>, vector<1x64x64xbf16>
    %37 = vector.shape_cast %36 : vector<1x64x64xbf16> to vector<64x64xbf16>
    %cst_38 = arith.constant dense<0.000000e+00> : vector<16x64xf32>
    %38 = tpu.matmul %35, %37, %cst_38 {dimension_numbers = #tpu.dot_dimension_numbers<[1], [0], [0], [1], [0, 0, 1, 1], [], []>} : vector<16x64xbf16>, vector<64x64xbf16>, vector<16x64xf32> -> vector<16x64xf32>
    %39 = arith.addf %33, %38 : vector<16x64xf32>
    %c24 = arith.constant 24 : index
    %c0_39 = arith.constant 0 : index
    %40 = vector.load %arg5[%c24, %c0_39] : memref<32x128xf32, #tpu.memory_space<vmem>>, vector<8x16xf32>
    %41 = arith.truncf %40 : vector<8x16xf32> to vector<8x16xbf16>
    %42 = arith.truncf %39 : vector<16x64xf32> to vector<16x64xbf16>
    %cst_40 = arith.constant dense<0.000000e+00> : vector<8x64xf32>
    %43 = tpu.matmul %41, %42, %cst_40 {dimension_numbers = #tpu.dot_dimension_numbers<[1], [0], [0], [1], [0, 0, 1, 1], [], []>} : vector<8x16xbf16>, vector<16x64xbf16>, vector<8x64xf32> -> vector<8x64xf32>
    %cst_41 = arith.constant 0.000000e+00 : f32
    %44 = vector.broadcast %cst_41 : f32 to vector<8x64xf32>
    %45 = arith.maximumf %43, %44 : vector<8x64xf32>
    %46 = arith.truncf %45 : vector<8x64xf32> to vector<8x64xbf16>
    %47 = vector.shape_cast %46 : vector<8x64xbf16> to vector<2x4x64xbf16>
    %48 = vector.extract_strided_slice %47 {offsets = [0, 0, 0], sizes = [2, 1, 64], strides = [1, 1, 1]} : vector<2x4x64xbf16> to vector<2x1x64xbf16>
    %49 = vector.shape_cast %48 : vector<2x1x64xbf16> to vector<2x64xbf16>
    %c0_42 = arith.constant 0 : index
    %c0_43 = arith.constant 0 : index
    %50 = vector.load %arg8[%c0_42, %c0_43] : memref<2x256xbf16, #tpu.memory_space<vmem>>, vector<2x64xbf16>
    tpu.vector_store %arg8[%c0_42, %c0_43], %49 {strides = array<i32>} : memref<2x256xbf16, #tpu.memory_space<vmem>>, vector<2x64xbf16>,
    %51 = vector.extract_strided_slice %47 {offsets = [0, 1, 0], sizes = [2, 1, 64], strides = [1, 1, 1]} : vector<2x4x64xbf16> to vector<2x1x64xbf16>
    %52 = vector.shape_cast %51 : vector<2x1x64xbf16> to vector<2x64xbf16>
    %c0_44 = arith.constant 0 : index
    %c64 = arith.constant 64 : index
    %53 = vector.load %arg8[%c0_44, %c64] : memref<2x256xbf16, #tpu.memory_space<vmem>>, vector<2x64xbf16>
    tpu.vector_store %arg8[%c0_44, %c64], %52 {strides = array<i32>} : memref<2x256xbf16, #tpu.memory_space<vmem>>, vector<2x64xbf16>,
    %54 = vector.extract_strided_slice %47 {offsets = [0, 2, 0], sizes = [2, 1, 64], strides = [1, 1, 1]} : vector<2x4x64xbf16> to vector<2x1x64xbf16>
    %55 = vector.shape_cast %54 : vector<2x1x64xbf16> to vector<2x64xbf16>
    %c0_45 = arith.constant 0 : index
    %c128 = arith.constant 128 : index
    %56 = vector.load %arg8[%c0_45, %c128] : memref<2x256xbf16, #tpu.memory_space<vmem>>, vector<2x64xbf16>
    tpu.vector_store %arg8[%c0_45, %c128], %55 {strides = array<i32>} : memref<2x256xbf16, #tpu.memory_space<vmem>>, vector<2x64xbf16>,
    %57 = vector.extract_strided_slice %47 {offsets = [0, 3, 0], sizes = [2, 1, 64], strides = [1, 1, 1]} : vector<2x4x64xbf16> to vector<2x1x64xbf16>
    %58 = vector.shape_cast %57 : vector<2x1x64xbf16> to vector<2x64xbf16>
    %c0_46 = arith.constant 0 : index
    %c192 = arith.constant 192 : index
    %59 = vector.load %arg8[%c0_46, %c192] : memref<2x256xbf16, #tpu.memory_space<vmem>>, vector<2x64xbf16>
    tpu.vector_store %arg8[%c0_46, %c192], %58 {strides = array<i32>} : memref<2x256xbf16, #tpu.memory_space<vmem>>, vector<2x64xbf16>,
    %c2_47 = arith.constant 2 : index
    %c0_48 = arith.constant 0 : index
    %60 = vector.load %arg5[%c2_47, %c0_48] : memref<32x128xf32, #tpu.memory_space<vmem>>, vector<1x128xf32>
    %c0_49 = arith.constant 0 : index
    %c0_50 = arith.constant 0 : index
    %61 = vector.load %arg8[%c0_49, %c0_50] : memref<2x256xbf16, #tpu.memory_space<vmem>>, vector<2x256xbf16>
    %c0_51 = arith.constant 0 : index
    %c0_52 = arith.constant 0 : index
    %62 = vector.load %arg4[%c0_51, %c0_52] : memref<256x128xbf16, #tpu.memory_space<vmem>>, vector<256x128xbf16>
    %cst_53 = arith.constant dense<0.000000e+00> : vector<2x128xf32>
    %63 = tpu.matmul %61, %62, %cst_53 {dimension_numbers = #tpu.dot_dimension_numbers<[1], [0], [0], [1], [0, 0, 1, 1], [], []>} : vector<2x256xbf16>, vector<256x128xbf16>, vector<2x128xf32> -> vector<2x128xf32>
    %64 = vector.broadcast %60 : vector<1x128xf32> to vector<2x128xf32>
    %65 = arith.addf %63, %64 : vector<2x128xf32>
    %c0_54 = arith.constant 0 : index
    %c0_55 = arith.constant 0 : index
    %c0_56 = arith.constant 0 : index
    %66 = vector.load %arg6[%c0_54, %c0_55, %c0_56] : memref<1x2x128xf32, #tpu.memory_space<vmem>>, vector<1x2x128xf32>
    %67 = vector.shape_cast %66 : vector<1x2x128xf32> to vector<2x128xf32>
    %68 = vector.shape_cast %65 : vector<2x128xf32> to vector<1x2x128xf32>
    tpu.vector_store %arg6[%c0_54, %c0_55, %c0_56], %68 {strides = array<i32>} : memref<1x2x128xf32, #tpu.memory_space<vmem>>, vector<1x2x128xf32>,
    return
  }
  func.func @transform_0(%arg0: i32) -> (i32, i32, i32) {
    %c0_i32 = arith.constant 0 : i32
    %c0_i32_0 = arith.constant 0 : i32
    %c0_i32_1 = arith.constant 0 : i32
    return %arg0, %c0_i32, %c0_i32_0 : i32, i32, i32
  }
  func.func @transform_1(%arg0: i32) -> (i32, i32) {
    %c0_i32 = arith.constant 0 : i32
    %c0_i32_0 = arith.constant 0 : i32
    %c0_i32_1 = arith.constant 0 : i32
    return %c0_i32, %c0_i32_0 : i32, i32
  }
  func.func @transform_2(%arg0: i32) -> (i32, i32, i32) {
    %c0_i32 = arith.constant 0 : i32
    %c0_i32_0 = arith.constant 0 : i32
    %c0_i32_1 = arith.constant 0 : i32
    %c0_i32_2 = arith.constant 0 : i32
    return %c0_i32, %c0_i32_0, %c0_i32_1 : i32, i32, i32
  }
  func.func @transform_3(%arg0: i32) -> (i32, i32) {
    %c0_i32 = arith.constant 0 : i32
    %c0_i32_0 = arith.constant 0 : i32
    %c0_i32_1 = arith.constant 0 : i32
    return %c0_i32, %c0_i32_0 : i32, i32
  }
  func.func @transform_4(%arg0: i32) -> (i32, i32) {
    %c0_i32 = arith.constant 0 : i32
    %c0_i32_0 = arith.constant 0 : i32
    %c0_i32_1 = arith.constant 0 : i32
    return %c0_i32, %c0_i32_0 : i32, i32
  }
  func.func @transform_5(%arg0: i32) -> (i32, i32, i32) {
    %c0_i32 = arith.constant 0 : i32
    %c0_i32_0 = arith.constant 0 : i32
    %c0_i32_1 = arith.constant 0 : i32
    return %arg0, %c0_i32, %c0_i32_0 : i32, i32, i32
  }
}

</mosaic_0001>

<llo_original>
// kernel: tpu_custom_call.1
$region0: #{tpu_custom_call.1}
  #allocation0 [shape = 'u32[]', space=smem, size = 0x4, offset = 0x4, fixed_abs, tag = 'smem constant byte address 0x4 - core index']
  #allocation1 [shape = 'u32[144,128]{1,0:T(1,128)}', space=vmem, size = 0x12000, scoped, tag = 'internal scratch']
  #allocation2 [shape = 'bf16[2,10,64]{2,1,0:T(8,128)(2,1)}', space=vmem, size = 0x2000, scoped, tag = 'scratch operand']
  #allocation3 [shape = 'bf16[2,256]{1,0:T(2,128)(2,1)}', space=vmem, size = 0x400, scoped, tag = 'scratch operand']
  %s0 = inlined_call_operand.vmem [shape: bf16[2,16,192], index: 0, kind: input, shape index: {}]
  %s1 = inlined_call_operand.vmem [shape: bf16[192,64], index: 1, kind: input, shape index: {}]
  %s2 = inlined_call_operand.hbm [shape: bf16[3,64,64], index: 2, kind: input, shape index: {}]
  %s3 = inlined_call_operand.vmem [shape: bf16[256,128], index: 3, kind: input, shape index: {}]
  %s4 = inlined_call_operand.hbm [shape: f32[32,128], index: 4, kind: input, shape index: {}]
  %s5 = inlined_call_operand.hbm [shape: f32[1,2,128], index: 5, kind: output, shape index: {}]
  %s6 = sld [smem:[#allocation0]]
  $region38: #{tpu_custom_call.1} parent=0
    _
  %s8 = ssub.s32 1, %s6
  %s9 = scalar_select 0, %s8, %s6
  $region1: #{tpu_custom_call.1} parent=0
    #allocation4 [shape = 'u8[49152]{0}', space=vmem, size = 0xc000, scoped, tag = 'input window, operand 2, single buffered']
    #allocation5 [shape = 's32[1]{0}', space=sflag, size = 0x4, scoped, tag = 'scoped memory for tpu_custom_call.1']
    #allocation6 [shape = 's32[1]{0}', space=sflag, size = 0x4, scoped, tag = 'scoped memory for tpu_custom_call.1']
    #allocation7 [shape = 'u8[16384]{0}', space=vmem, size = 0x4000, scoped, tag = 'input window, operand 4, single buffered']
    #allocation8 [shape = 's32[1]{0}', space=sflag, size = 0x4, scoped, tag = 'scoped memory for tpu_custom_call.1']
    #allocation9 [shape = 'u8[1024]{0}', space=vmem, size = 0x400, scoped, tag = 'output window, operand 0, single buffered']
    %10 = vsyncpa [#allocation5], 0
    %11 = vsyncpa [#allocation8], 0
    %12 = vsyncpa [#allocation6], 0
    // Predicated region
    $region2: #{tpu_custom_call.1} parent=1 // pred_check
      _
    $region3: #{tpu_custom_call.1} parent=1 // pred_check_branch
      %14 = sbr.rel (0) target = $region5
    $region4: #{tpu_custom_call.1} parent=1 // pred_region
      _
    $region5: #{tpu_custom_call.1} parent=1 // pred_fallthru
      _
    // Predicated region
    $region6: #{tpu_custom_call.1} parent=1 // pred_check
      _
    $region7: #{tpu_custom_call.1} parent=1 // pred_check_branch
      %16 = sbr.rel (0) target = $region9
    $region8: #{tpu_custom_call.1} parent=1 // pred_region
      _
    $region9: #{tpu_custom_call.1} parent=1 // pred_fallthru
      _
    // Predicated region
    $region10: #{tpu_custom_call.1} parent=1 // pred_check
      _
    $region11: #{tpu_custom_call.1} parent=1 // pred_check_branch
      %18 = sbr.rel (0) target = $region13
    $region12: #{tpu_custom_call.1} parent=1 // pred_region
      %s20 = ssub.s32 1536, 1536
      %21 = vsyncadd [#allocation5], %s20
      %s22 = sshll.u32 [#allocation4], 4
      %s23 = int_to_ptr.vmem [resolvable:$true] %s22
      %28 = dma.hbm_to_vmem [thread:$0]  %s2, 1536, %s23, [#allocation5], 64, 64, 4
    $region13: #{tpu_custom_call.1} parent=1 // pred_fallthru
      _
    // Predicated region
    $region14: #{tpu_custom_call.1} parent=1 // pred_check
      _
    $region15: #{tpu_custom_call.1} parent=1 // pred_check_branch
      %30 = sbr.rel (0) target = $region17
    $region16: #{tpu_custom_call.1} parent=1 // pred_region
      _
    $region17: #{tpu_custom_call.1} parent=1 // pred_fallthru
      _
    // Predicated region
    $region18: #{tpu_custom_call.1} parent=1 // pred_check
      _
    $region19: #{tpu_custom_call.1} parent=1 // pred_check_branch
      %32 = sbr.rel (0) target = $region21
    $region20: #{tpu_custom_call.1} parent=1 // pred_region
      %s34 = ssub.s32 512, 512
      %35 = vsyncadd [#allocation8], %s34
      %s36 = sshll.u32 [#allocation7], 4
      %s37 = int_to_ptr.vmem [resolvable:$true] %s36
      %42 = dma.hbm_to_vmem [thread:$0]  %s4, 512, %s37, [#allocation8], 128, 128, 8
    $region21: #{tpu_custom_call.1} parent=1 // pred_fallthru
      _
    // Predicated region
    $region22: #{tpu_custom_call.1} parent=1 // pred_check
      _
    $region23: #{tpu_custom_call.1} parent=1 // pred_check_branch
      %44 = sbr.rel (0) target = $region25
    $region24: #{tpu_custom_call.1} parent=1 // pred_region
      %45 = dma.done [#allocation5], 1536
    $region25: #{tpu_custom_call.1} parent=1 // pred_fallthru
      _
    // Predicated region
    $region26: #{tpu_custom_call.1} parent=1 // pred_check
      _
    $region27: #{tpu_custom_call.1} parent=1 // pred_check_branch
      %47 = sbr.rel (0) target = $region29
    $region28: #{tpu_custom_call.1} parent=1 // pred_region
      %48 = dma.done [#allocation8], 512
    $region29: #{tpu_custom_call.1} parent=1 // pred_fallthru
      _
    %v50 = vld [vmem:[#allocation7] sm:$0x1]
    %v51 = vld [vmem:[%s0] sm:$0xff]
    %v52 = vld [vmem:[%s0 + $0x8] sm:$0xff]
    %v53 = vld [vmem:[%s0 + $0x10] sm:$0xff]
    %v54 = vld [vmem:[%s0 + $0x18] sm:$0xff]
    %v55 = vld [vmem:[%s1] sm:$0xf]
    %v56 = vld [vmem:[%s1 + $0x4] sm:$0xf]
    %v57 = vld [vmem:[%s1 + $0x8] sm:$0xf]
    %v58 = vld [vmem:[%s1 + $0xc] sm:$0xf]
    %v59 = vld [vmem:[%s1 + $0x10] sm:$0xf]
    %v60 = vld [vmem:[%s1 + $0x14] sm:$0xf]
    %v61 = vld [vmem:[%s1 + $0x18] sm:$0xf]
    %v62 = vld [vmem:[%s1 + $0x1c] sm:$0xf]
    %v63 = vld [vmem:[%s1 + $0x20] sm:$0xf]
    %v64 = vld [vmem:[%s1 + $0x24] sm:$0xf]
    %v65 = vld [vmem:[%s1 + $0x28] sm:$0xf]
    %v66 = vld [vmem:[%s1 + $0x2c] sm:$0xf]
    %v67 = vld [vmem:[%s1 + $0x30] sm:$0xf]
    %v68 = vld [vmem:[%s1 + $0x34] sm:$0xf]
    %v69 = vld [vmem:[%s1 + $0x38] sm:$0xf]
    %v70 = vld [vmem:[%s1 + $0x3c] sm:$0xf]
    %v71 = vld [vmem:[%s1 + $0x40] sm:$0xf]
    %v72 = vld [vmem:[%s1 + $0x44] sm:$0xf]
    %v73 = vld [vmem:[%s1 + $0x48] sm:$0xf]
    %v74 = vld [vmem:[%s1 + $0x4c] sm:$0xf]
    %v75 = vld [vmem:[%s1 + $0x50] sm:$0xf]
    %v76 = vld [vmem:[%s1 + $0x54] sm:$0xf]
    %v77 = vld [vmem:[%s1 + $0x58] sm:$0xf]
    %v78 = vld [vmem:[%s1 + $0x5c] sm:$0xf]
    %v79 = vlaneseq
    %v80 = vshrl.u32 %v79, 7
    %v81 = vsub.s32 0, %v80
    %v82 = vrot.slane %v50, %v81
    %v87 = vunpack.c.l.b16 %v51
    %v88 = vunpack.c.h.b16 %v51
    %v89 = vunpack.c.l.b16 %v52
    %v90 = vunpack.c.h.b16 %v52
    %v91 = vunpack.c.l.b16 %v53
    %v92 = vunpack.c.h.b16 %v53
    %v93 = vunpack.c.l.b16 %v54
    %v94 = vunpack.c.h.b16 %v54
    %v95 = vpack.c.b16 %v89, %v87
    %v96 = vpack.c.b16 %v90, %v88
    %v97 = vpack.c.b16 %v93, %v91
    %v98 = vpack.c.b16 %v94, %v92
    %v125 = vunpack.c.l.b16 %v55
    %v126 = vunpack.c.l.b16 %v56
    %v127 = vunpack.c.l.b16 %v57
    %v128 = vunpack.c.l.b16 %v58
    %v129 = vunpack.c.l.b16 %v59
    %v130 = vunpack.c.l.b16 %v60
    %v131 = vunpack.c.l.b16 %v61
    %v132 = vunpack.c.l.b16 %v62
    %v133 = vunpack.c.l.b16 %v63
    %v134 = vunpack.c.l.b16 %v64
    %v135 = vunpack.c.l.b16 %v65
    %v136 = vunpack.c.l.b16 %v66
    %v137 = vunpack.c.l.b16 %v67
    %v138 = vunpack.c.l.b16 %v68
    %v139 = vunpack.c.l.b16 %v69
    %v140 = vunpack.c.l.b16 %v70
    %v141 = vunpack.c.l.b16 %v71
    %v142 = vunpack.c.l.b16 %v72
    %v143 = vunpack.c.l.b16 %v73
    %v144 = vunpack.c.l.b16 %v74
    %v145 = vunpack.c.l.b16 %v75
    %v146 = vunpack.c.l.b16 %v76
    %v147 = vunpack.c.l.b16 %v77
    %v148 = vunpack.c.l.b16 %v78
    %v149 = vpack.c.b16 %v126, %v125
    %v150 = vpack.c.b16 %v128, %v127
    %v151 = vpack.c.b16 %v130, %v129
    %v152 = vpack.c.b16 %v132, %v131
    %v153 = vpack.c.b16 %v134, %v133
    %v154 = vpack.c.b16 %v136, %v135
    %v155 = vpack.c.b16 %v138, %v137
    %v156 = vpack.c.b16 %v140, %v139
    %v157 = vpack.c.b16 %v142, %v141
    %v158 = vpack.c.b16 %v144, %v143
    %v159 = vpack.c.b16 %v146, %v145
    %v160 = vpack.c.b16 %v148, %v147
    %vm173 = vcmask 523264
    %v175 = vsel %vm173, %v96, 0
    %v178 = vsel %vm173, %v98, 0
    %180 = vmatprep.subr.bf16.mxu0 0
    %181 = vmatpush1.bf16.msra.mxu0 %v149
    %182 = vmatprep.subr.bf16.mxu0 0
    %183 = vmatpush1.bf16.msra.mxu0 %v150
    %184 = vmatprep.subr.bf16.mxu0 0
    %185 = vmatpush1.bf16.msra.mxu0 %v151
    %186 = vmatprep.subr.bf16.mxu0 0
    %187 = vmatpush1.bf16.msra.mxu0 %v152
    %188 = vmatprep.subr.bf16.mxu0 0
    %189 = vmatpush1.bf16.msra.mxu0 %v153
    %190 = vmatprep.subr.bf16.mxu0 0
    %191 = vmatpush1.bf16.msra.mxu0 %v154
    %192 = vmatprep.subr.bf16.mxu0 0
    %193 = vmatpush1.bf16.msra.mxu0 %v155
    %194 = vmatprep.subr.bf16.mxu0 0
    %195 = vmatpush1.bf16.msra.mxu0 %v156
    %196 = vmatprep.subr.bf16.mxu0 0
    %197 = vmatpush1.bf16.msra.mxu0 %v157
    %198 = vmatprep.subr.bf16.mxu0 0
    %199 = vmatpush1.bf16.msra.mxu0 %v158
    %200 = vmatprep.subr.bf16.mxu0 0
    %201 = vmatpush1.bf16.msra.mxu0 %v159
    %202 = vmatprep.subr.bf16.mxu0 0
    %203 = vmatpush1.bf16.msra.mxu0 %v160
    %204 = vmatprep.subr.bf16.mxu0 0
    %205 = vmatpush1.bf16.msra.mxu0 0
    %206 = vmatprep.subr.bf16.mxu0 0
    %207 = vmatpush1.bf16.msra.mxu0 0
    %208 = vmatprep.subr.bf16.mxu0 0
    %209 = vmatpush1.bf16.msra.mxu0 0
    %210 = vmatprep.subr.bf16.mxu0 0
    %211 = vmatpush1.bf16.msra.mxu0 0
    %212 = vmatprep.mubr.bf16.mxu0 %v175
    %213 = vmatmul.mubr.bf16.gmra.mrb[0].mxu0 %v95
    %v214 = vpop.f32.mrb[0].mxu0
    %v215 = vadd.f32 %v82, %v214
    %v216 = vpop.f32.mrb[0].mxu0
    %v217 = vpop.f32.mrb[0].mxu0
    %v218 = vadd.f32 %v82, %v217
    %v219 = vpop.f32.mrb[0].mxu0
    %220 = vmatprep.mubr.bf16.mxu0 %v178
    %221 = vmatmul.mubr.bf16.gmra.mrb[0].mxu0 %v97
    %v222 = vpop.f32.mrb[0].mxu0
    %v223 = vadd.f32 %v82, %v222
    %v224 = vpop.f32.mrb[0].mxu0
    %v225 = vpop.f32.mrb[0].mxu0
    %v226 = vadd.f32 %v82, %v225
    %v227 = vpop.f32.mrb[0].mxu0
    %228 = vdwg.mxu0
    %v229 = vld [vmem:[#allocation7 + $0x8] sm:$0xff]
    %v230 = vld [vmem:[#allocation7 + $0x10] sm:$0xff]
    %v231 = vpack.c.bf16 %v230, %v229
    %v232 = vpack.c.bf16 %v218, %v215
    %v233 = vpack.c.bf16 %v226, %v223
    %vm234 = vcmask 261120
    %v236 = vsel %vm234, %v231, 0
    %238 = vmatprep.subr.bf16.mxu0 0
    %239 = vmatpush1.bf16.msra.mxu0 %v232
    %240 = vmatprep.subr.bf16.mxu0 0
    %241 = vmatpush1.bf16.msra.mxu0 %v233
    %242 = vmatprep.subr.bf16.mxu0 0
    %243 = vmatpush1.bf16.msra.mxu0 0
    %244 = vmatprep.subr.bf16.mxu0 0
    %245 = vmatpush1.bf16.msra.mxu0 0
    %246 = vmatprep.subr.bf16.mxu0 0
    %247 = vmatpush1.bf16.msra.mxu0 0
    %248 = vmatprep.subr.bf16.mxu0 0
    %249 = vmatpush1.bf16.msra.mxu0 0
    %250 = vmatprep.subr.bf16.mxu0 0
    %251 = vmatpush1.bf16.msra.mxu0 0
    %252 = vmatprep.subr.bf16.mxu0 0
    %253 = vmatpush1.bf16.msra.mxu0 0
    %254 = vmatprep.subr.bf16.mxu0 0
    %255 = vmatpush1.bf16.msra.mxu0 0
    %256 = vmatprep.subr.bf16.mxu0 0
    %257 = vmatpush1.bf16.msra.mxu0 0
    %258 = vmatprep.subr.bf16.mxu0 0
    %259 = vmatpush1.bf16.msra.mxu0 0
    %260 = vmatprep.subr.bf16.mxu0 0
    %261 = vmatpush1.bf16.msra.mxu0 0
    %262 = vmatprep.subr.bf16.mxu0 0
    %263 = vmatpush1.bf16.msra.mxu0 0
    %264 = vmatprep.subr.bf16.mxu0 0
    %265 = vmatpush1.bf16.msra.mxu0 0
    %266 = vmatprep.subr.bf16.mxu0 0
    %267 = vmatpush1.bf16.msra.mxu0 0
    %268 = vmatprep.subr.bf16.mxu0 0
    %269 = vmatpush1.bf16.msra.mxu0 0
    %270 = vmatprep.mubr.bf16.mxu0 0
    %271 = vmatmul.mubr.bf16.gmra.mrb[0].mxu0 %v236
    %v272 = vpop.f32.mrb[0].mxu0
    %v273 = vadd.f32 0.0, %v272
    %v274 = vpop.f32.mrb[0].mxu0
    %v275 = vpop.f32.mrb[0].mxu0
    %v276 = vadd.f32 0.0, %v275
    %v277 = vpop.f32.mrb[0].mxu0
    %278 = vdwg.mxu0
    %v279 = vmax.f32 %v273, 0.0
    %v280 = vmax.f32 %v276, 0.0
    %v281 = vld [vmem:[#allocation7 + $0x1] sm:$0x1]
    %vm282 = vcmask 516096
    %vm283 = vsmask.f32 256
    %vm284 = vmand %vm282, %vm283
    %v285 = vld [vmem:[#allocation2] sm:$0x1]
    %v286 = vsel %vm284, 0, %v285
    %287 = vst [vmem:[#allocation2] sm:$0x1] %v286
    %v288 = vld [vmem:[#allocation2 + $0x8] sm:$0x1]
    %v289 = vsel %vm284, 0, %v288
    %290 = vst [vmem:[#allocation2 + $0x8] sm:$0x1] %v289
    %vm291 = vsmask.f32 7938
    %vm292 = vmand %vm282, %vm291
    %v293 = vld [vmem:[#allocation2 + $0x4] sm:$0x1]
    %v294 = vsel %vm292, 0, %v293
    %295 = vst [vmem:[#allocation2 + $0x4] sm:$0x1] %v294
    %v296 = vld [vmem:[#allocation2 + $0xc] sm:$0x1]
    %v297 = vsel %vm292, 0, %v296
    %298 = vst [vmem:[#allocation2 + $0xc] sm:$0x1] %v297
    %v299 = vpack.c.bf16 %v280, %v279
    %v301 = vunpack.c.l.b16 %v299
    %v302 = vunpack.c.h.b16 %v299
    %v303 = vpack.c.b16 %v301, %v301
    %v304 = vpack.c.b16 %v302, %v302
    %v306 = vshrl.u32 %v303, 16
    %v308 = vrot.slane %v306, 7
    %v309 = vshll.u32 %v303, 16
    %v311 = vor.u32 %v308, %v309
    %v312 = vrot.slane %v308, 4
    %v314 = vshrl.u32 %v304, 16
    %v316 = vrot.slane %v314, 7
    %v317 = vshll.u32 %v304, 16
    %v319 = vor.u32 %v316, %v317
    %v320 = vrot.slane %v316, 4
    %vm325 = vcmask 519168
    %vm326 = vmand %vm325, %vm291
    %v327 = vld [vmem:[#allocation2] sm:$0xf]
    %v328 = vsel %vm326, %v311, %v327
    %329 = vst [vmem:[#allocation2] sm:$0xf] %v328
    %v330 = vld [vmem:[#allocation2 + $0x4] sm:$0x1]
    %v331 = vsel %vm284, %v312, %v330
    %332 = vst [vmem:[#allocation2 + $0x4] sm:$0x1] %v331
    %v333 = vld [vmem:[#allocation2 + $0x8] sm:$0xf]
    %v334 = vsel %vm326, %v319, %v333
    %335 = vst [vmem:[#allocation2 + $0x8] sm:$0xf] %v334
    %v336 = vld [vmem:[#allocation2 + $0xc] sm:$0x1]
    %v337 = vsel %vm284, %v320, %v336
    %338 = vst [vmem:[#allocation2 + $0xc] sm:$0x1] %v337
    %v339 = vlaneseq
    %v340 = vshrl.u32 %v339, 7
    %v341 = vsub.s32 0, %v340
    %v342 = vrot.slane %v281, %v341
    %v343 = vld [vmem:[#allocation2] sm:$0xf]
    %v344 = vld [vmem:[#allocation2 + $0x8] sm:$0xf]
    %v345 = vld [vmem:[#allocation4] sm:$0xf]
    %v346 = vld [vmem:[#allocation4 + $0x4] sm:$0xf]
    %v347 = vld [vmem:[#allocation4 + $0x8] sm:$0xf]
    %v348 = vld [vmem:[#allocation4 + $0xc] sm:$0xf]
    %v349 = vld [vmem:[#allocation4 + $0x10] sm:$0xf]
    %v350 = vld [vmem:[#allocation4 + $0x14] sm:$0xf]
    %v351 = vld [vmem:[#allocation4 + $0x18] sm:$0xf]
    %v352 = vld [vmem:[#allocation4 + $0x1c] sm:$0xf]
    %v355 = vunpack.c.l.b16 %v343
    %v356 = vunpack.c.l.b16 %v344
    %v357 = vpack.c.b16 %v356, %v355
    %v366 = vunpack.c.l.b16 %v345
    %v367 = vunpack.c.l.b16 %v346
    %v368 = vunpack.c.l.b16 %v347
    %v369 = vunpack.c.l.b16 %v348
    %v370 = vunpack.c.l.b16 %v349
    %v371 = vunpack.c.l.b16 %v350
    %v372 = vunpack.c.l.b16 %v351
    %v373 = vunpack.c.l.b16 %v352
    %v374 = vpack.c.b16 %v367, %v366
    %v375 = vpack.c.b16 %v369, %v368
    %v376 = vpack.c.b16 %v371, %v370
    %v377 = vpack.c.b16 %v373, %v372
    %v383 = vsel %vm173, %v357, 0
    %385 = vmatprep.subr.bf16.mxu0 0
    %386 = vmatpush1.bf16.msra.mxu0 %v374
    %387 = vmatprep.subr.bf16.mxu0 0
    %388 = vmatpush1.bf16.msra.mxu0 %v375
    %389 = vmatprep.subr.bf16.mxu0 0
    %390 = vmatpush1.bf16.msra.mxu0 %v376
    %391 = vmatprep.subr.bf16.mxu0 0
    %392 = vmatpush1.bf16.msra.mxu0 %v377
    %393 = vmatprep.subr.bf16.mxu0 0
    %394 = vmatpush1.bf16.msra.mxu0 0
    %395 = vmatprep.subr.bf16.mxu0 0
    %396 = vmatpush1.bf16.msra.mxu0 0
    %397 = vmatprep.subr.bf16.mxu0 0
    %398 = vmatpush1.bf16.msra.mxu0 0
    %399 = vmatprep.subr.bf16.mxu0 0
    %400 = vmatpush1.bf16.msra.mxu0 0
    %401 = vmatprep.subr.bf16.mxu0 0
    %402 = vmatpush1.bf16.msra.mxu0 0
    %403 = vmatprep.subr.bf16.mxu0 0
    %404 = vmatpush1.bf16.msra.mxu0 0
    %405 = vmatprep.subr.bf16.mxu0 0
    %406 = vmatpush1.bf16.msra.mxu0 0
    %407 = vmatprep.subr.bf16.mxu0 0
    %408 = vmatpush1.bf16.msra.mxu0 0
    %409 = vmatprep.subr.bf16.mxu0 0
    %410 = vmatpush1.bf16.msra.mxu0 0
    %411 = vmatprep.subr.bf16.mxu0 0
    %412 = vmatpush1.bf16.msra.mxu0 0
    %413 = vmatprep.subr.bf16.mxu0 0
    %414 = vmatpush1.bf16.msra.mxu0 0
    %415 = vmatprep.subr.bf16.mxu0 0
    %416 = vmatpush1.bf16.msra.mxu0 0
    %417 = vmatprep.mubr.bf16.mxu0 0
    %418 = vmatmul.mubr.bf16.gmra.mrb[0].mxu0 %v383
    %v419 = vpop.f32.mrb[0].mxu0
    %v420 = vadd.f32 0.0, %v419
    %v421 = vpop.f32.mrb[0].mxu0
    %v422 = vpop.f32.mrb[0].mxu0
    %v423 = vadd.f32 0.0, %v422
    %v424 = vpop.f32.mrb[0].mxu0
    %425 = vdwg.mxu0
    %v426 = vadd.f32 %v342, %v420
    %v427 = vadd.f32 %v342, %v423
    %v428 = vld [vmem:[#allocation2] sm:$0xf]
    %v429 = vld [vmem:[#allocation2 + $0x4] sm:$0x1]
    %v430 = vld [vmem:[#allocation2 + $0x8] sm:$0xf]
    %v431 = vld [vmem:[#allocation2 + $0xc] sm:$0x1]
    %vm432 = vsmask.f32 3328
    %vm433 = vsmask.f32 7440
    %vm434 = vmor %vm432, %vm433
    %v436 = vshrl.u32 %v428, 16
    %v438 = vrot.slane %v436, 4
    %v439 = vshll.u32 %v428, 16
    %v441 = vrot.slane %v439, 5
    %v442 = vor.u32 %v438, %v441
    %v443 = vrot.slane %v442, 4
    %v445 = vshll.u32 %v429, 16
    %v447 = vrot.slane %v445, 5
    %v448 = vsel %vm434, %v443, %v447
    %v450 = vshrl.u32 %v430, 16
    %v452 = vrot.slane %v450, 4
    %v453 = vshll.u32 %v430, 16
    %v455 = vrot.slane %v453, 5
    %v456 = vor.u32 %v452, %v455
    %v457 = vrot.slane %v456, 4
    %v459 = vshll.u32 %v431, 16
    %v461 = vrot.slane %v459, 5
    %v462 = vsel %vm434, %v457, %v461
    %s463 = scalar_lea.vmem [#allocation4], 32
    %v464 = vld [vmem:[%s463] sm:$0xf]
    %v465 = vld [vmem:[%s463 + $0x4] sm:$0xf]
    %v466 = vld [vmem:[%s463 + $0x8] sm:$0xf]
    %v467 = vld [vmem:[%s463 + $0xc] sm:$0xf]
    %v468 = vld [vmem:[%s463 + $0x10] sm:$0xf]
    %v469 = vld [vmem:[%s463 + $0x14] sm:$0xf]
    %v470 = vld [vmem:[%s463 + $0x18] sm:$0xf]
    %v471 = vld [vmem:[%s463 + $0x1c] sm:$0xf]
    %v472 = vunpack.c.l.b16 %v448
    %v473 = vunpack.c.l.b16 %v462
    %v474 = vpack.c.b16 %v473, %v472
    %v483 = vunpack.c.l.b16 %v464
    %v484 = vunpack.c.l.b16 %v465
    %v485 = vunpack.c.l.b16 %v466
    %v486 = vunpack.c.l.b16 %v467
    %v487 = vunpack.c.l.b16 %v468
    %v488 = vunpack.c.l.b16 %v469
    %v489 = vunpack.c.l.b16 %v470
    %v490 = vunpack.c.l.b16 %v471
    %v491 = vpack.c.b16 %v484, %v483
    %v492 = vpack.c.b16 %v486, %v485
    %v493 = vpack.c.b16 %v488, %v487
    %v494 = vpack.c.b16 %v490, %v489
    %v500 = vsel %vm173, %v474, 0
    %502 = vmatprep.subr.bf16.mxu0 0
    %503 = vmatpush1.bf16.msra.mxu0 %v491
    %504 = vmatprep.subr.bf16.mxu0 0
    %505 = vmatpush1.bf16.msra.mxu0 %v492
    %506 = vmatprep.subr.bf16.mxu0 0
    %507 = vmatpush1.bf16.msra.mxu0 %v493
    %508 = vmatprep.subr.bf16.mxu0 0
    %509 = vmatpush1.bf16.msra.mxu0 %v494
    %510 = vmatprep.subr.bf16.mxu0 0
    %511 = vmatpush1.bf16.msra.mxu0 0
    %512 = vmatprep.subr.bf16.mxu0 0
    %513 = vmatpush1.bf16.msra.mxu0 0
    %514 = vmatprep.subr.bf16.mxu0 0
    %515 = vmatpush1.bf16.msra.mxu0 0
    %516 = vmatprep.subr.bf16.mxu0 0
    %517 = vmatpush1.bf16.msra.mxu0 0
    %518 = vmatprep.subr.bf16.mxu0 0
    %519 = vmatpush1.bf16.msra.mxu0 0
    %520 = vmatprep.subr.bf16.mxu0 0
    %521 = vmatpush1.bf16.msra.mxu0 0
    %522 = vmatprep.subr.bf16.mxu0 0
    %523 = vmatpush1.bf16.msra.mxu0 0
    %524 = vmatprep.subr.bf16.mxu0 0
    %525 = vmatpush1.bf16.msra.mxu0 0
    %526 = vmatprep.subr.bf16.mxu0 0
    %527 = vmatpush1.bf16.msra.mxu0 0
    %528 = vmatprep.subr.bf16.mxu0 0
    %529 = vmatpush1.bf16.msra.mxu0 0
    %530 = vmatprep.subr.bf16.mxu0 0
    %531 = vmatpush1.bf16.msra.mxu0 0
    %532 = vmatprep.subr.bf16.mxu0 0
    %533 = vmatpush1.bf16.msra.mxu0 0
    %534 = vmatprep.mubr.bf16.mxu0 0
    %535 = vmatmul.mubr.bf16.gmra.mrb[0].mxu0 %v500
    %v536 = vpop.f32.mrb[0].mxu0
    %v537 = vadd.f32 0.0, %v536
    %v538 = vpop.f32.mrb[0].mxu0
    %v539 = vpop.f32.mrb[0].mxu0
    %v540 = vadd.f32 0.0, %v539
    %v541 = vpop.f32.mrb[0].mxu0
    %542 = vdwg.mxu0
    %v543 = vadd.f32 %v426, %v537
    %v544 = vadd.f32 %v427, %v540
    %v545 = vld [vmem:[#allocation2] sm:$0xe]
    %v546 = vld [vmem:[#allocation2 + $0x8] sm:$0xe]
    %vm551 = vcmask 1042432
    %vm552 = vcmask 1046532
    %vm553 = vmor %vm551, %vm552
    %v554 = vrot.slane %v545, 5
    %v555 = vrot.slane %v554, 4
    %v556 = vrot.slane %v429, 5
    %v557 = vsel %vm553, %v555, %v556
    %v558 = vrot.slane %v546, 5
    %v559 = vrot.slane %v558, 4
    %v560 = vrot.slane %v431, 5
    %v561 = vsel %vm553, %v559, %v560
    %s562 = scalar_lea.vmem [#allocation4], 64
    %v563 = vld [vmem:[%s562] sm:$0xf]
    %v564 = vld [vmem:[%s562 + $0x4] sm:$0xf]
    %v565 = vld [vmem:[%s562 + $0x8] sm:$0xf]
    %v566 = vld [vmem:[%s562 + $0xc] sm:$0xf]
    %v567 = vld [vmem:[%s562 + $0x10] sm:$0xf]
    %v568 = vld [vmem:[%s562 + $0x14] sm:$0xf]
    %v569 = vld [vmem:[%s562 + $0x18] sm:$0xf]
    %v570 = vld [vmem:[%s562 + $0x1c] sm:$0xf]
    %v571 = vunpack.c.l.b16 %v557
    %v572 = vunpack.c.l.b16 %v561
    %v573 = vpack.c.b16 %v572, %v571
    %v582 = vunpack.c.l.b16 %v563
    %v583 = vunpack.c.l.b16 %v564
    %v584 = vunpack.c.l.b16 %v565
    %v585 = vunpack.c.l.b16 %v566
    %v586 = vunpack.c.l.b16 %v567
    %v587 = vunpack.c.l.b16 %v568
    %v588 = vunpack.c.l.b16 %v569
    %v589 = vunpack.c.l.b16 %v570
    %v590 = vpack.c.b16 %v583, %v582
    %v591 = vpack.c.b16 %v585, %v584
    %v592 = vpack.c.b16 %v587, %v586
    %v593 = vpack.c.b16 %v589, %v588
    %v599 = vsel %vm173, %v573, 0
    %601 = vmatprep.subr.bf16.mxu0 0
    %602 = vmatpush1.bf16.msra.mxu0 %v590
    %603 = vmatprep.subr.bf16.mxu0 0
    %604 = vmatpush1.bf16.msra.mxu0 %v591
    %605 = vmatprep.subr.bf16.mxu0 0
    %606 = vmatpush1.bf16.msra.mxu0 %v592
    %607 = vmatprep.subr.bf16.mxu0 0
    %608 = vmatpush1.bf16.msra.mxu0 %v593
    %609 = vmatprep.subr.bf16.mxu0 0
    %610 = vmatpush1.bf16.msra.mxu0 0
    %611 = vmatprep.subr.bf16.mxu0 0
    %612 = vmatpush1.bf16.msra.mxu0 0
    %613 = vmatprep.subr.bf16.mxu0 0
    %614 = vmatpush1.bf16.msra.mxu0 0
    %615 = vmatprep.subr.bf16.mxu0 0
    %616 = vmatpush1.bf16.msra.mxu0 0
    %617 = vmatprep.subr.bf16.mxu0 0
    %618 = vmatpush1.bf16.msra.mxu0 0
    %619 = vmatprep.subr.bf16.mxu0 0
    %620 = vmatpush1.bf16.msra.mxu0 0
    %621 = vmatprep.subr.bf16.mxu0 0
    %622 = vmatpush1.bf16.msra.mxu0 0
    %623 = vmatprep.subr.bf16.mxu0 0
    %624 = vmatpush1.bf16.msra.mxu0 0
    %625 = vmatprep.subr.bf16.mxu0 0
    %626 = vmatpush1.bf16.msra.mxu0 0
    %627 = vmatprep.subr.bf16.mxu0 0
    %628 = vmatpush1.bf16.msra.mxu0 0
    %629 = vmatprep.subr.bf16.mxu0 0
    %630 = vmatpush1.bf16.msra.mxu0 0
    %631 = vmatprep.subr.bf16.mxu0 0
    %632 = vmatpush1.bf16.msra.mxu0 0
    %633 = vmatprep.mubr.bf16.mxu0 0
    %634 = vmatmul.mubr.bf16.gmra.mrb[0].mxu0 %v599
    %v635 = vpop.f32.mrb[0].mxu0
    %v636 = vadd.f32 0.0, %v635
    %v637 = vpop.f32.mrb[0].mxu0
    %v638 = vpop.f32.mrb[0].mxu0
    %v639 = vadd.f32 0.0, %v638
    %v640 = vpop.f32.mrb[0].mxu0
    %641 = vdwg.mxu0
    %v642 = vadd.f32 %v543, %v636
    %v643 = vadd.f32 %v544, %v639
    %v644 = vld [vmem:[#allocation7 + $0x18] sm:$0xff]
    %v645 = vpack.c.bf16 %v644, %v644
    %v646 = vpack.c.bf16 %v643, %v642
    %vm647 = vcmask 130048
    %v649 = vsel %vm647, %v645, 0
    %651 = vmatprep.subr.bf16.mxu0 0
    %652 = vmatpush1.bf16.msra.mxu0 %v646
    %653 = vmatprep.subr.bf16.mxu0 0
    %654 = vmatpush1.bf16.msra.mxu0 0
    %655 = vmatprep.subr.bf16.mxu0 0
    %656 = vmatpush1.bf16.msra.mxu0 0
    %657 = vmatprep.subr.bf16.mxu0 0
    %658 = vmatpush1.bf16.msra.mxu0 0
    %659 = vmatprep.subr.bf16.mxu0 0
    %660 = vmatpush1.bf16.msra.mxu0 0
    %661 = vmatprep.subr.bf16.mxu0 0
    %662 = vmatpush1.bf16.msra.mxu0 0
    %663 = vmatprep.subr.bf16.mxu0 0
    %664 = vmatpush1.bf16.msra.mxu0 0
    %665 = vmatprep.subr.bf16.mxu0 0
    %666 = vmatpush1.bf16.msra.mxu0 0
    %667 = vmatprep.subr.bf16.mxu0 0
    %668 = vmatpush1.bf16.msra.mxu0 0
    %669 = vmatprep.subr.bf16.mxu0 0
    %670 = vmatpush1.bf16.msra.mxu0 0
    %671 = vmatprep.subr.bf16.mxu0 0
    %672 = vmatpush1.bf16.msra.mxu0 0
    %673 = vmatprep.subr.bf16.mxu0 0
    %674 = vmatpush1.bf16.msra.mxu0 0
    %675 = vmatprep.subr.bf16.mxu0 0
    %676 = vmatpush1.bf16.msra.mxu0 0
    %677 = vmatprep.subr.bf16.mxu0 0
    %678 = vmatpush1.bf16.msra.mxu0 0
    %679 = vmatprep.subr.bf16.mxu0 0
    %680 = vmatpush1.bf16.msra.mxu0 0
    %681 = vmatprep.subr.bf16.mxu0 0
    %682 = vmatpush1.bf16.msra.mxu0 0
    %683 = vmatprep.mubr.bf16.mxu0 0
    %684 = vmatmul.mubr.bf16.gmra.mrb[0].mxu0 %v649
    %v685 = vpop.f32.mrb[0].mxu0
    %v686 = vadd.f32 0.0, %v685
    %v687 = vpop.f32.mrb[0].mxu0
    %v688 = vpop.f32.mrb[0].mxu0
    %v689 = vpop.f32.mrb[0].mxu0
    %690 = vdwg.mxu0
    %v691 = vmax.f32 %v686, 0.0
    %v692 = vpack.c.bf16 %v691, %v691
    %v695 = vunpack.c.l.s4 1983009808
    %v696 = vunpack.c.0.s8 %v695
    %v697 = vlaneseq
    %v698 = vshrl.u32 %v697, 7
    %v699 = vsub.s32 %v696, %v698
    %v700 = vrot.slane %v692, %v699
    %v701 = vcombine.high %v700, %v700
    %v703 = vunpack.c.l.s4 1966171168
    %v704 = vunpack.c.0.s8 %v703
    %v705 = vlaneseq
    %v706 = vshrl.u32 %v705, 7
    %v707 = vsub.s32 %v704, %v706
    %v708 = vrot.slane %v700, %v707
    %v710 = vunpack.c.l.s4 1966171168
    %v711 = vunpack.c.0.s8 %v710
    %v712 = vlaneseq
    %v713 = vshrl.u32 %v712, 7
    %v714 = vsub.s32 %v711, %v713
    %v715 = vrot.slane %v701, %v714
    %v717 = vunpack.c.l.s4 1935823168
    %v718 = vunpack.c.0.s8 %v717
    %v719 = vlaneseq
    %v720 = vshrl.u32 %v719, 7
    %v721 = vsub.s32 %v718, %v720
    %v722 = vrot.slane %v708, %v721
    %v724 = vunpack.c.l.s4 1935823168
    %v725 = vunpack.c.0.s8 %v724
    %v726 = vlaneseq
    %v727 = vshrl.u32 %v726, 7
    %v728 = vsub.s32 %v725, %v727
    %v729 = vrot.slane %v722, %v728
    %v731 = vunpack.c.l.s4 1935823168
    %v732 = vunpack.c.0.s8 %v731
    %v733 = vlaneseq
    %v734 = vshrl.u32 %v733, 7
    %v735 = vsub.s32 %v732, %v734
    %v736 = vrot.slane %v715, %v735
    %v738 = vunpack.c.l.s4 1935823168
    %v739 = vunpack.c.0.s8 %v738
    %v740 = vlaneseq
    %v741 = vshrl.u32 %v740, 7
    %v742 = vsub.s32 %v739, %v741
    %v743 = vrot.slane %v736, %v742
    %v744 = vunpack.c.l.b16 %v729
    %v745 = vunpack.c.l.b16 %v743
    %v746 = vrot.slane %v745, 7
    %vm747 = vcmask 1041409
    %v748 = vsel %vm747, %v746, %v744
    %v749 = vpack.c.b16 %v748, %v748
    %v751 = vunpack.c.l.s4 1966171168
    %v752 = vunpack.c.0.s8 %v751
    %v753 = vlaneseq
    %v754 = vshrl.u32 %v753, 7
    %v755 = vsub.s32 %v752, %v754
    %v756 = vrot.slane %v749, %v755
    %v758 = vunpack.c.l.s4 1966171168
    %v759 = vunpack.c.0.s8 %v758
    %v760 = vlaneseq
    %v761 = vshrl.u32 %v760, 7
    %v762 = vsub.s32 %v759, %v761
    %v763 = vrot.slane %v756, %v762
    %vm765 = vcmask 516096
    %766 = vst.msk [vmem:[#allocation3] sm:$0x1] %vm765, %v763
    %v767 = vrot.slane %v744, 1
    %v768 = vsel %vm747, %v745, %v767
    %v769 = vpack.c.b16 %v768, %v768
    %v771 = vunpack.c.l.s4 1966171168
    %v772 = vunpack.c.0.s8 %v771
    %v773 = vlaneseq
    %v774 = vshrl.u32 %v773, 7
    %v775 = vsub.s32 %v772, %v774
    %v776 = vrot.slane %v769, %v775
    %v778 = vunpack.c.l.s4 1966171168
    %v779 = vunpack.c.0.s8 %v778
    %v780 = vlaneseq
    %v781 = vshrl.u32 %v780, 7
    %v782 = vsub.s32 %v779, %v781
    %v783 = vrot.slane %v776, %v782
    %784 = vrot.lane.b32.xlu0 %v783, 64
    %v785 = vpop.permute.xlu0 %784
    %vm787 = vcmask 1040896
    %788 = vst.msk [vmem:[#allocation3] sm:$0x1] %vm787, %v785
    %v789 = vcombine.high %v708, %v708
    %v790 = vcombine.high %v715, %v715
    %v792 = vunpack.c.l.s4 1935823168
    %v793 = vunpack.c.0.s8 %v792
    %v794 = vlaneseq
    %v795 = vshrl.u32 %v794, 7
    %v796 = vsub.s32 %v793, %v795
    %v797 = vrot.slane %v789, %v796
    %v799 = vunpack.c.l.s4 1935823168
    %v800 = vunpack.c.0.s8 %v799
    %v801 = vlaneseq
    %v802 = vshrl.u32 %v801, 7
    %v803 = vsub.s32 %v800, %v802
    %v804 = vrot.slane %v797, %v803
    %v806 = vunpack.c.l.s4 1935823168
    %v807 = vunpack.c.0.s8 %v806
    %v808 = vlaneseq
    %v809 = vshrl.u32 %v808, 7
    %v810 = vsub.s32 %v807, %v809
    %v811 = vrot.slane %v790, %v810
    %v813 = vunpack.c.l.s4 1935823168
    %v814 = vunpack.c.0.s8 %v813
    %v815 = vlaneseq
    %v816 = vshrl.u32 %v815, 7
    %v817 = vsub.s32 %v814, %v816
    %v818 = vrot.slane %v811, %v817
    %v819 = vunpack.c.l.b16 %v804
    %v820 = vunpack.c.l.b16 %v818
    %v821 = vrot.slane %v820, 7
    %v822 = vsel %vm747, %v821, %v819
    %v823 = vpack.c.b16 %v822, %v822
    %v825 = vunpack.c.l.s4 1966171168
    %v826 = vunpack.c.0.s8 %v825
    %v827 = vlaneseq
    %v828 = vshrl.u32 %v827, 7
    %v829 = vsub.s32 %v826, %v828
    %v830 = vrot.slane %v823, %v829
    %v832 = vunpack.c.l.s4 1966171168
    %v833 = vunpack.c.0.s8 %v832
    %v834 = vlaneseq
    %v835 = vshrl.u32 %v834, 7
    %v836 = vsub.s32 %v833, %v835
    %v837 = vrot.slane %v830, %v836
    %839 = vst.msk [vmem:[#allocation3 + $0x1] sm:$0x1] %vm765, %v837
    %v840 = vrot.slane %v819, 1
    %v841 = vsel %vm747, %v820, %v840
    %v842 = vpack.c.b16 %v841, %v841
    %v844 = vunpack.c.l.s4 1966171168
    %v845 = vunpack.c.0.s8 %v844
    %v846 = vlaneseq
    %v847 = vshrl.u32 %v846, 7
    %v848 = vsub.s32 %v845, %v847
    %v849 = vrot.slane %v842, %v848
    %v851 = vunpack.c.l.s4 1966171168
    %v852 = vunpack.c.0.s8 %v851
    %v853 = vlaneseq
    %v854 = vshrl.u32 %v853, 7
    %v855 = vsub.s32 %v852, %v854
    %v856 = vrot.slane %v849, %v855
    %857 = vrot.lane.b32.xlu0 %v856, 64
    %v858 = vpop.permute.xlu0 %857
    %860 = vst.msk [vmem:[#allocation3 + $0x1] sm:$0x1] %vm787, %v858
    %v861 = vld [vmem:[#allocation7 + $0x2] sm:$0x1]
    %v862 = vld [vmem:[#allocation3] sm:$0x3]
    %v863 = vld [vmem:[%s3] sm:$0xf]
    %v864 = vld [vmem:[%s3 + $0x4] sm:$0xf]
    %v865 = vld [vmem:[%s3 + $0x8] sm:$0xf]
    %v866 = vld [vmem:[%s3 + $0xc] sm:$0xf]
    %v867 = vld [vmem:[%s3 + $0x10] sm:$0xf]
    %v868 = vld [vmem:[%s3 + $0x14] sm:$0xf]
    %v869 = vld [vmem:[%s3 + $0x18] sm:$0xf]
    %v870 = vld [vmem:[%s3 + $0x1c] sm:$0xf]
    %v871 = vld [vmem:[%s3 + $0x20] sm:$0xf]
    %v872 = vld [vmem:[%s3 + $0x24] sm:$0xf]
    %v873 = vld [vmem:[%s3 + $0x28] sm:$0xf]
    %v874 = vld [vmem:[%s3 + $0x2c] sm:$0xf]
    %v875 = vld [vmem:[%s3 + $0x30] sm:$0xf]
    %v876 = vld [vmem:[%s3 + $0x34] sm:$0xf]
    %v877 = vld [vmem:[%s3 + $0x38] sm:$0xf]
    %v878 = vld [vmem:[%s3 + $0x3c] sm:$0xf]
    %v879 = vld [vmem:[%s3 + $0x40] sm:$0xf]
    %v880 = vld [vmem:[%s3 + $0x44] sm:$0xf]
    %v881 = vld [vmem:[%s3 + $0x48] sm:$0xf]
    %v882 = vld [vmem:[%s3 + $0x4c] sm:$0xf]
    %v883 = vld [vmem:[%s3 + $0x50] sm:$0xf]
    %v884 = vld [vmem:[%s3 + $0x54] sm:$0xf]
    %v885 = vld [vmem:[%s3 + $0x58] sm:$0xf]
    %v886 = vld [vmem:[%s3 + $0x5c] sm:$0xf]
    %v887 = vld [vmem:[%s3 + $0x60] sm:$0xf]
    %v888 = vld [vmem:[%s3 + $0x64] sm:$0xf]
    %v889 = vld [vmem:[%s3 + $0x68] sm:$0xf]
    %v890 = vld [vmem:[%s3 + $0x6c] sm:$0xf]
    %v891 = vld [vmem:[%s3 + $0x70] sm:$0xf]
    %v892 = vld [vmem:[%s3 + $0x74] sm:$0xf]
    %v893 = vld [vmem:[%s3 + $0x78] sm:$0xf]
    %v894 = vld [vmem:[%s3 + $0x7c] sm:$0xf]
    %v895 = vlaneseq
    %v896 = vshrl.u32 %v895, 7
    %v897 = vsub.s32 0, %v896
    %v898 = vrot.slane %v861, %v897
    %v901 = vunpack.c.l.s4 1966171168
    %v902 = vunpack.c.0.s8 %v901
    %v903 = vlaneseq
    %v904 = vshrl.u32 %v903, 7
    %v905 = vsub.s32 %v902, %v904
    %v906 = vrot.slane %v862, %v905
    %v907 = vcombine.high %v906, %v906
    %v909 = vunpack.c.l.s4 1966171168
    %v910 = vunpack.c.0.s8 %v909
    %v911 = vlaneseq
    %v912 = vshrl.u32 %v911, 7
    %v913 = vsub.s32 %v910, %v912
    %v914 = vrot.slane %v906, %v913
    %v916 = vunpack.c.l.s4 1966171168
    %v917 = vunpack.c.0.s8 %v916
    %v918 = vlaneseq
    %v919 = vshrl.u32 %v918, 7
    %v920 = vsub.s32 %v917, %v919
    %v921 = vrot.slane %v907, %v920
    %v956 = vunpack.c.l.b16 %v863
    %v957 = vunpack.c.l.b16 %v864
    %v958 = vunpack.c.l.b16 %v865
    %v959 = vunpack.c.l.b16 %v866
    %v960 = vunpack.c.l.b16 %v867
    %v961 = vunpack.c.l.b16 %v868
    %v962 = vunpack.c.l.b16 %v869
    %v963 = vunpack.c.l.b16 %v870
    %v964 = vunpack.c.l.b16 %v871
    %v965 = vunpack.c.l.b16 %v872
    %v966 = vunpack.c.l.b16 %v873
    %v967 = vunpack.c.l.b16 %v874
    %v968 = vunpack.c.l.b16 %v875
    %v969 = vunpack.c.l.b16 %v876
    %v970 = vunpack.c.l.b16 %v877
    %v971 = vunpack.c.l.b16 %v878
    %v972 = vunpack.c.l.b16 %v879
    %v973 = vunpack.c.l.b16 %v880
    %v974 = vunpack.c.l.b16 %v881
    %v975 = vunpack.c.l.b16 %v882
    %v976 = vunpack.c.l.b16 %v883
    %v977 = vunpack.c.l.b16 %v884
    %v978 = vunpack.c.l.b16 %v885
    %v979 = vunpack.c.l.b16 %v886
    %v980 = vunpack.c.l.b16 %v887
    %v981 = vunpack.c.l.b16 %v888
    %v982 = vunpack.c.l.b16 %v889
    %v983 = vunpack.c.l.b16 %v890
    %v984 = vunpack.c.l.b16 %v891
    %v985 = vunpack.c.l.b16 %v892
    %v986 = vunpack.c.l.b16 %v893
    %v987 = vunpack.c.l.b16 %v894
    %v988 = vpack.c.b16 %v957, %v956
    %v989 = vpack.c.b16 %v959, %v958
    %v990 = vpack.c.b16 %v961, %v960
    %v991 = vpack.c.b16 %v963, %v962
    %v992 = vpack.c.b16 %v965, %v964
    %v993 = vpack.c.b16 %v967, %v966
    %v994 = vpack.c.b16 %v969, %v968
    %v995 = vpack.c.b16 %v971, %v970
    %v996 = vpack.c.b16 %v973, %v972
    %v997 = vpack.c.b16 %v975, %v974
    %v998 = vpack.c.b16 %v977, %v976
    %v999 = vpack.c.b16 %v979, %v978
    %v1000 = vpack.c.b16 %v981, %v980
    %v1001 = vpack.c.b16 %v983, %v982
    %v1002 = vpack.c.b16 %v985, %v984
    %v1003 = vpack.c.b16 %v987, %v986
    %1020 = vmatprep.subr.bf16.mxu0 0
    %1021 = vmatpush1.bf16.msra.mxu0 %v988
    %1022 = vmatprep.subr.bf16.mxu0 0
    %1023 = vmatpush1.bf16.msra.mxu0 %v989
    %1024 = vmatprep.subr.bf16.mxu0 0
    %1025 = vmatpush1.bf16.msra.mxu0 %v990
    %1026 = vmatprep.subr.bf16.mxu0 0
    %1027 = vmatpush1.bf16.msra.mxu0 %v991
    %1028 = vmatprep.subr.bf16.mxu0 0
    %1029 = vmatpush1.bf16.msra.mxu0 %v992
    %1030 = vmatprep.subr.bf16.mxu0 0
    %1031 = vmatpush1.bf16.msra.mxu0 %v993
    %1032 = vmatprep.subr.bf16.mxu0 0
    %1033 = vmatpush1.bf16.msra.mxu0 %v994
    %1034 = vmatprep.subr.bf16.mxu0 0
    %1035 = vmatpush1.bf16.msra.mxu0 %v995
    %1036 = vmatprep.subr.bf16.mxu0 0
    %1037 = vmatpush1.bf16.msra.mxu0 %v996
    %1038 = vmatprep.subr.bf16.mxu0 0
    %1039 = vmatpush1.bf16.msra.mxu0 %v997
    %1040 = vmatprep.subr.bf16.mxu0 0
    %1041 = vmatpush1.bf16.msra.mxu0 %v998
    %1042 = vmatprep.subr.bf16.mxu0 0
    %1043 = vmatpush1.bf16.msra.mxu0 %v999
    %1044 = vmatprep.subr.bf16.mxu0 0
    %1045 = vmatpush1.bf16.msra.mxu0 %v1000
    %1046 = vmatprep.subr.bf16.mxu0 0
    %1047 = vmatpush1.bf16.msra.mxu0 %v1001
    %1048 = vmatprep.subr.bf16.mxu0 0
    %1049 = vmatpush1.bf16.msra.mxu0 %v1002
    %1050 = vmatprep.subr.bf16.mxu0 0
    %1051 = vmatpush1.bf16.msra.mxu0 %v1003
    %1052 = vmatprep.mubr.bf16.mxu0 %v921
    %1053 = vmatmul.mubr.bf16.gmra.mrb[0].mxu0 %v914
    %v1054 = vpop.f32.mrb[0].mxu0
    %v1055 = vadd.f32 %v898, %v1054
    %v1056 = vpop.f32.mrb[0].mxu0
    %v1057 = vpop.f32.mrb[0].mxu0
    %v1058 = vpop.f32.mrb[0].mxu0
    %1059 = vdwg.mxu0
    %1060 = vst [vmem:[#allocation9] sm:$0x3] %v1055
    // Predicated region
    $region30: #{tpu_custom_call.1} parent=1 // pred_check
      _
    $region31: #{tpu_custom_call.1} parent=1 // pred_check_branch
      %1062 = sbr.rel (0) target = $region33
    $region32: #{tpu_custom_call.1} parent=1 // pred_region
      %s1064 = ssub.s32 32, 32
      %1065 = vsyncadd [#allocation6], %s1064
      %s1067 = sshll.u32 [#allocation9], 4
      %s1068 = int_to_ptr.vmem [resolvable:$true] %s1067
      %1070 = dma.vmem_to_hbm [thread:$0]  %s1068, 32, %s5, [#allocation6]
    $region33: #{tpu_custom_call.1} parent=1 // pred_fallthru
      _
    // Predicated region
    $region34: #{tpu_custom_call.1} parent=1 // pred_check
      _
    $region35: #{tpu_custom_call.1} parent=1 // pred_check_branch
      %1072 = sbr.rel (0) target = $region37
    $region36: #{tpu_custom_call.1} parent=1 // pred_region
      %1073 = dma.done [#allocation6], 32
    $region37: #{tpu_custom_call.1} parent=1 // pred_fallthru
      _
    %1074 = vsyncpa [#allocation5], 1
    %1075 = vsyncpa [#allocation8], 1
    %1076 = vsyncpa [#allocation6], 1

</llo_original>
